<compile_context>
chip_gen: v7x
topology: tpu7x:2x2x1
jax: 0.10.0
libtpu: 0.0.40
codegen_flags: <defaults>
</compile_context>

<pallas_src>
import math

import jax
import jax.numpy as jnp
from jax.experimental import pallas as pl
from jax.experimental.pallas import tpu as pltpu


# ---------------------------------------------------------------------------
# Streaming kernel:  out[B, Htot] = c[B, Kc_pad] @ Wc[Kc_pad, Htot]
# Grid = (h_splits, K_tiles).  The K (reduction) axis is last / "arbitrary";
# the h-split axis is "parallel" (megacore).  A VMEM f32 accumulator is
# resident across K; the (B, Hs) slab is stored on the last K step.
# ---------------------------------------------------------------------------
def _stream_kernel(c_ref, wc_ref, out_ref, acc_ref):
    k = pl.program_id(1)

    @pl.when(k == 0)
    def _():
        acc_ref[...] = jnp.zeros_like(acc_ref)

    acc_ref[...] += jnp.dot(c_ref[...], wc_ref[...],
                            preferred_element_type=jnp.float32)

    @pl.when(k == pl.num_programs(1) - 1)
    def _():
        out_ref[...] = acc_ref[...]


def stream_cond_matmul(c, wc, *, h_splits=1, tk=None, wc_buffers=2,
                       vmem_limit_bytes=None):
    """c: [B, Kc_pad] (bf16, zero-padded), wc: [Kc_pad, Htot] (bf16, padded).
    Returns [B, Htot] f32."""
    B, Kc_pad = c.shape
    Kc_pad_w, Htot = wc.shape
    assert Kc_pad == Kc_pad_w, "c and Wc reduction dims must match (both padded)"
    if tk is None:
        tk = min(Kc_pad, 4096)
    assert Kc_pad % tk == 0, f"tk={tk} must divide padded cond dim {Kc_pad}"
    assert tk % 128 == 0 or tk == Kc_pad, "reduction tile must be lane-aligned"
    assert Htot % h_splits == 0, "hidden slab must divide evenly over h_splits"
    Hs = Htot // h_splits
    assert h_splits == 1 or Hs % 128 == 0, "per-split slab must be 128-aligned"
    kt = Kc_pad // tk

    # Streamed-weight BlockSpec.  Default double buffering; allow a deeper
    # pipeline (e.g. Buffered(3)) to be swept on mem-bound configs.
    wc_kwargs = {} if wc_buffers == 2 else dict(pipeline_mode=pl.Buffered(wc_buffers))
    wc_spec = pl.BlockSpec((tk, Hs), lambda s, k: (k, s), **wc_kwargs)

    w_item = jnp.dtype(wc.dtype).itemsize
    c_item = jnp.dtype(c.dtype).itemsize
    needed = (max(wc_buffers, 2) * tk * Hs * w_item      # streamed W1 tiles
              + 2 * B * tk * c_item                      # streamed c tiles
              + 3 * B * Hs * 4)                          # out block + acc
    if vmem_limit_bytes is None:
        vmem_limit_bytes = min(int(needed * 1.25) + (4 << 20), 100 << 20)

    flops = 2 * B * Kc_pad * Htot
    bytes_accessed = (wc.size * w_item                    # W1 streamed once
                      + h_splits * c.size * c_item        # c re-streamed per split
                      + B * Htot * 4)

    return pl.pallas_call(
        _stream_kernel,
        out_shape=jax.ShapeDtypeStruct((B, Htot), jnp.float32),
        grid_spec=pltpu.PrefetchScalarGridSpec(
            num_scalar_prefetch=0,
            grid=(h_splits, kt),
            in_specs=[pl.BlockSpec((B, tk), lambda s, k: (0, k)),   # c tile
                      wc_spec],                                     # W1 tile
            out_specs=pl.BlockSpec((B, Hs), lambda s, k: (0, s)),
            scratch_shapes=[pltpu.VMEM((B, Hs), jnp.float32)],
        ),
        compiler_params=pltpu.CompilerParams(
            dimension_semantics=("parallel", "arbitrary"),
            vmem_limit_bytes=int(vmem_limit_bytes)),
        cost_estimate=pl.CostEstimate(flops=int(flops), transcendentals=0,
                                      bytes_accessed=int(bytes_accessed)),
    )(c, wc)


# ---------------------------------------------------------------------------
# Parameters (stored as [in, out] = transpose of torch nn.Linear [out, in]).
# ---------------------------------------------------------------------------
def _xavier(key, fan_in, fan_out, dtype=jnp.float32):
    bound = math.sqrt(6.0 / (fan_in + fan_out))
    return jax.random.uniform(key, (fan_in, fan_out), dtype, -bound, bound)


def init_cvae_params(key, input_dim, cond_dim, hidden_dim, latent_dim):
    ks = jax.random.split(key, 8)
    enc = dict(w1=_xavier(ks[0], input_dim + cond_dim, hidden_dim),
               b1=jnp.zeros((hidden_dim,), jnp.float32),
               wmu=_xavier(ks[1], hidden_dim, latent_dim),
               bmu=jnp.zeros((latent_dim,), jnp.float32),
               wlv=_xavier(ks[2], hidden_dim, latent_dim),
               blv=jnp.zeros((latent_dim,), jnp.float32))
    dec = dict(w1=_xavier(ks[3], latent_dim + cond_dim, hidden_dim),
               b1=jnp.zeros((hidden_dim,), jnp.float32),
               wout=_xavier(ks[4], hidden_dim, input_dim),
               bout=jnp.zeros((input_dim,), jnp.float32))
    pri = dict(w1=_xavier(ks[5], cond_dim, hidden_dim),
               b1=jnp.zeros((hidden_dim,), jnp.float32),
               wmu=_xavier(ks[6], hidden_dim, latent_dim),
               bmu=jnp.zeros((latent_dim,), jnp.float32),
               wlv=_xavier(ks[7], hidden_dim, latent_dim),
               blv=jnp.zeros((latent_dim,), jnp.float32))
    return dict(enc=enc, dec=dec, prior=pri,
                dims=dict(input_dim=input_dim, cond_dim=cond_dim,
                          hidden_dim=hidden_dim, latent_dim=latent_dim))


def _round_up(x, m):
    return (x + m - 1) // m * m


def prepare_cvae_params(raw, *, pad_to=16384, default_tk=8192,
                        weight_dtype=jnp.bfloat16):
    """One-time kernel-friendly repack.

    * Fuses the enc / prior / dec fc1 conditioning slabs along H into one
      (Kc_pad, 3H) matrix, zero-padded to a multiple of `pad_to` so tk can be
      tuned per chip generation without re-packing.
    * Streamed weight is cast to bf16 once; all small epilogue weights
      (W1x, W1z, heads, biases) stay f32 — they never enter the kernel.
    """
    dims = raw['dims']
    Din, Dc, H, L = (dims['input_dim'], dims['cond_dim'],
                     dims['hidden_dim'], dims['latent_dim'])
    Kc_pad = _round_up(Dc, pad_to)
    default_tk = min(default_tk, Kc_pad)
    assert Kc_pad % default_tk == 0

    enc, dec, pri = raw['enc'], raw['dec'], raw['prior']
    # Fused conditioning weight, column order: [encoder | prior | decoder].
    w1c_all = jnp.concatenate([enc['w1'][Din:], pri['w1'], dec['w1'][L:]],
                              axis=1)
    w1c_all = jnp.pad(w1c_all, ((0, Kc_pad - Dc), (0, 0))).astype(weight_dtype)

    return dict(
        dims=dims, cond_pad=Kc_pad, default_tk=default_tk,
        w1c_all=w1c_all,                              # (Kc_pad, 3H) bf16
        enc=dict(w1x=enc['w1'][:Din], b1=enc['b1'],
                 whead=jnp.concatenate([enc['wmu'], enc['wlv']], axis=1),
                 bhead=jnp.concatenate([enc['bmu'], enc['blv']])),
        prior=dict(b1=pri['b1'],
                   whead=jnp.concatenate([pri['wmu'], pri['wlv']], axis=1),
                   bhead=jnp.concatenate([pri['bmu'], pri['blv']])),
        dec=dict(w1z=dec['w1'][:L], b1=dec['b1'],
                 wout=dec['wout'], bout=dec['bout']),
    )


def prepare_cond(c, params):
    """Cast c to the streamed dtype and zero-pad the ragged reduction dim once."""
    Kc, Kc_pad = params['dims']['cond_dim'], params['cond_pad']
    assert c.shape[1] == Kc
    c = c.astype(params['w1c_all'].dtype)
    if Kc_pad > Kc:
        c = jnp.pad(c, ((0, 0), (0, Kc_pad - Kc)))
    return c


# ---------------------------------------------------------------------------
# Tiny f32 epilogue shared by the kernel forward and the plain-JAX reference:
# relu(fc1) + heads + reparameterization + sigmoid.  All of this is O(B*H) or
# B x 512 x 7840 at most — negligible next to the 1.2 GB W1 stream.
# ---------------------------------------------------------------------------
def _cvae_epilogue(acc, x, eps, params):
    dims = params['dims']
    H, L = dims['hidden_dim'], dims['latent_dim']
    enc, pri, dec = params['enc'], params['prior'], params['dec']
    acc_enc, acc_pri, acc_dec = acc[:, :H], acc[:, H:2 * H], acc[:, 2 * H:]

    # Encoder
    h = jax.nn.relu(acc_enc + x @ enc['w1x'] + enc['b1'])
    head = h @ enc['whead'] + enc['bhead']
    mu, logvar = head[:, :L], jnp.clip(head[:, L:], -10.0, 10.0)

    # Reparameterization.
    # TODO(synk): torch.randn_like is sampled by the caller via jax.random
    # (eps argument), not inside the Pallas kernel.
    z = mu + jnp.exp(0.5 * logvar) * eps

    # Decoder (the z-dependent part of its fc1 is this tiny matmul)
    hd = jax.nn.relu(acc_dec + z @ dec['w1z'] + dec['b1'])
    x_recon = jax.nn.sigmoid(hd @ dec['wout'] + dec['bout'])

    # Prior
    hp = jax.nn.relu(acc_pri + pri['b1'])
    headp = hp @ pri['whead'] + pri['bhead']
    mu_p, logvar_p = headp[:, :L], jnp.clip(headp[:, L:], -10.0, 10.0)

    return dict(x_recon=x_recon, mu=mu, logvar=logvar,
                mu_prior=mu_p, logvar_prior=logvar_p, z=z)


def cvae_forward(x, c, eps, params, *, h_splits=1, tk=None, wc_buffers=2):
    """Full CVAE forward (encoder + reparam + decoder + prior).

    Tuning guidance: tk=4096-8192, h_splits=1 on v5e/v6e;
    tk=8192-16384, h_splits=2 on v7x (both TensorCores stream half of W1)."""
    cp = prepare_cond(c, params)
    acc = stream_cond_matmul(
        cp, params['w1c_all'], h_splits=h_splits,
        tk=tk if tk is not None else params['default_tk'],
        wc_buffers=wc_buffers)
    return _cvae_epilogue(acc, x, eps, params)


# ---------------------------------------------------------------------------
# Numerics-matched plain-JAX reference (same prepared bf16 weights, same
# epilogue, f32 accumulation).
# ---------------------------------------------------------------------------
def reference_cvae(x, c, eps, params):
    cp = prepare_cond(c, params)
    acc = jnp.dot(cp, params['w1c_all'], preferred_element_type=jnp.float32)
    return _cvae_epilogue(acc, x, eps, params)


if __name__ == "__main__":
    # Small shapes consistent with the module's structure
    # (original: input_dim=7840, cond_dim=392011, hidden=512, latent=64).
    # cond_dim is deliberately NOT a multiple of the tile so the ragged-K
    # padding path (which the real cond_dim=392011 needs) is exercised.
    B = 8
    INPUT_DIM = 128
    COND_DIM = 1000
    HIDDEN_DIM = 256
    LATENT_DIM = 64
    PAD_TO = 512       # production: 16384 (largest tk you will ever use)
    TK = 256           # production: 4096-8192 (v5e/v6e), 8192-16384 (v7x)

    key = jax.random.PRNGKey(0)
    kx, kc, kp, ke = jax.random.split(key, 4)
    x = jax.random.normal(kx, (B, INPUT_DIM), jnp.float32)
    c = jax.random.normal(kc, (B, COND_DIM), jnp.float32)
    eps = jax.random.normal(ke, (B, LATENT_DIM), jnp.float32)

    raw = init_cvae_params(kp, INPUT_DIM, COND_DIM, HIDDEN_DIM, LATENT_DIM)
    params = prepare_cvae_params(raw, pad_to=PAD_TO, default_tk=TK,
                                 weight_dtype=jnp.bfloat16)

    out = cvae_forward(x, c, eps, params, h_splits=1)
    out = jax.tree_util.tree_map(jax.block_until_ready, out)

    ref = reference_cvae(x, c, eps, params)
    for name in ('mu', 'logvar', 'mu_prior', 'logvar_prior', 'z', 'x_recon'):
        assert jnp.allclose(out[name], ref[name], atol=2e-2, rtol=2e-2), name

    # Megacore path (v7x): split the fused hidden dim over a leading
    # "parallel" grid axis and use a different (larger) reduction tile —
    # exercises both the h-split column indexing and tk re-tuning without
    # re-packing params.
    out2 = cvae_forward(x, c, eps, params, h_splits=2, tk=512)
    out2 = jax.tree_util.tree_map(jax.block_until_ready, out2)
    for name in ('mu', 'logvar', 'mu_prior', 'logvar_prior', 'z', 'x_recon'):
        assert jnp.allclose(out2[name], ref[name], atol=2e-2, rtol=2e-2), name

    print("KERNEL_OK")
</pallas_src>

<mosaic_0001>
module attributes {stable_mosaic.version = 11 : i64} {
  func.func @_stream_kernel(%arg0: i32, %arg1: i32, %arg2: memref<8x256xbf16, #tpu.memory_space<vmem>>, %arg3: memref<256x768xbf16, #tpu.memory_space<vmem>>, %arg4: memref<8x768xf32, #tpu.memory_space<vmem>>, %arg5: memref<8x768xf32, #tpu.memory_space<vmem>>) attributes {dimension_semantics = [#tpu.dimension_semantics<parallel>, #tpu.dimension_semantics<arbitrary>], iteration_bounds = array<i64: 1, 4>, scalar_prefetch = 0 : i64, scratch_operands = 1 : i64, tpu.core_type = #tpu.core_type<tc>, window_params = [{transform_indices = @transform_0, window_bounds = array<i64: 8, 256>}, {transform_indices = @transform_1, window_bounds = array<i64: 256, 768>}, {transform_indices = @transform_2, window_bounds = array<i64: 8, 768>}]} {
    %c0_i32 = arith.constant 0 : i32
    %0 = arith.cmpi eq, %arg1, %c0_i32 : i32
    %1 = arith.extui %0 : i1 to i32
    %c0_i32_0 = arith.constant 0 : i32
    %2 = arith.cmpi ne, %1, %c0_i32_0 : i32
    scf.if %2 {
      %cst_9 = arith.constant 0.000000e+00 : f32
      %12 = vector.broadcast %cst_9 : f32 to vector<8x768xf32>
      %c0_10 = arith.constant 0 : index
      %c0_11 = arith.constant 0 : index
      %13 = vector.load %arg5[%c0_10, %c0_11] : memref<8x768xf32, #tpu.memory_space<vmem>>, vector<8x768xf32>
      tpu.vector_store %arg5[%c0_10, %c0_11], %12 {strides = array<i32>} : memref<8x768xf32, #tpu.memory_space<vmem>>, vector<8x768xf32>,
    } else {
    }
    %c0 = arith.constant 0 : index
    %c0_1 = arith.constant 0 : index
    %3 = vector.load %arg5[%c0, %c0_1] : memref<8x768xf32, #tpu.memory_space<vmem>>, vector<8x768xf32>
    %c0_2 = arith.constant 0 : index
    %c0_3 = arith.constant 0 : index
    %4 = vector.load %arg2[%c0_2, %c0_3] : memref<8x256xbf16, #tpu.memory_space<vmem>>, vector<8x256xbf16>
    %c0_4 = arith.constant 0 : index
    %c0_5 = arith.constant 0 : index
    %5 = vector.load %arg3[%c0_4, %c0_5] : memref<256x768xbf16, #tpu.memory_space<vmem>>, vector<256x768xbf16>
    %cst = arith.constant dense<0.000000e+00> : vector<8x768xf32>
    %6 = tpu.matmul %4, %5, %cst {dimension_numbers = #tpu.dot_dimension_numbers<[1], [0], [0], [1], [0, 0, 1, 1], [], []>} : vector<8x256xbf16>, vector<256x768xbf16>, vector<8x768xf32> -> vector<8x768xf32>
    %7 = arith.addf %3, %6 : vector<8x768xf32>
    %c0_6 = arith.constant 0 : index
    %c0_7 = arith.constant 0 : index
    %8 = vector.load %arg5[%c0_6, %c0_7] : memref<8x768xf32, #tpu.memory_space<vmem>>, vector<8x768xf32>
    tpu.vector_store %arg5[%c0_6, %c0_7], %7 {strides = array<i32>} : memref<8x768xf32, #tpu.memory_space<vmem>>, vector<8x768xf32>,
    %c3_i32 = arith.constant 3 : i32
    %9 = arith.cmpi eq, %arg1, %c3_i32 : i32
    %10 = arith.extui %9 : i1 to i32
    %c0_i32_8 = arith.constant 0 : i32
    %11 = arith.cmpi ne, %10, %c0_i32_8 : i32
    scf.if %11 {
      %c0_9 = arith.constant 0 : index
      %c0_10 = arith.constant 0 : index
      %12 = vector.load %arg5[%c0_9, %c0_10] : memref<8x768xf32, #tpu.memory_space<vmem>>, vector<8x768xf32>
      %c0_11 = arith.constant 0 : index
      %c0_12 = arith.constant 0 : index
      %13 = vector.load %arg4[%c0_11, %c0_12] : memref<8x768xf32, #tpu.memory_space<vmem>>, vector<8x768xf32>
      tpu.vector_store %arg4[%c0_11, %c0_12], %12 {strides = array<i32>} : memref<8x768xf32, #tpu.memory_space<vmem>>, vector<8x768xf32>,
    } else {
    }
    return
  }
  func.func @transform_0(%arg0: i32, %arg1: i32) -> (i32, i32) {
    %c0_i32 = arith.constant 0 : i32
    %c0_i32_0 = arith.constant 0 : i32
    return %c0_i32, %arg1 : i32, i32
  }
  func.func @transform_1(%arg0: i32, %arg1: i32) -> (i32, i32) {
    %c0_i32 = arith.constant 0 : i32
    return %arg1, %arg0 : i32, i32
  }
  func.func @transform_2(%arg0: i32, %arg1: i32) -> (i32, i32) {
    %c0_i32 = arith.constant 0 : i32
    %c0_i32_0 = arith.constant 0 : i32
    return %c0_i32, %arg0 : i32, i32
  }
}

</mosaic_0001>

<llo_original>
// kernel: tpu_custom_call.1
$region0: #{tpu_custom_call.1}
  #allocation0 [shape = 'u32[]', space=smem, size = 0x4, offset = 0x4, fixed_abs, tag = 'smem constant byte address 0x4 - core index']
  #allocation1 [shape = 'u32[144,128]{1,0:T(1,128)}', space=vmem, size = 0x12000, scoped, tag = 'internal scratch']
  #allocation2 [shape = 'f32[8,768]{1,0:T(8,128)}', space=vmem, size = 0x6000, scoped, tag = 'scratch operand']
  %s0 = inlined_call_operand.hbm [shape: bf16[8,1024], index: 0, kind: input, shape index: {}]
  %s1 = inlined_call_operand.hbm [shape: bf16[1024,768], index: 1, kind: input, shape index: {}]
  %s2 = inlined_call_operand.hbm [shape: f32[8,768], index: 2, kind: output, shape index: {}]
  %s3 = sld [smem:[#allocation0]]
  $region57: #{tpu_custom_call.1} parent=0
    _
  %s5 = ssub.s32 1, %s3
  %s6 = scalar_select 0, %s5, %s3
  $region1: #{tpu_custom_call.1} parent=0
    #allocation3 [shape = 'u8[8192]{0}', space=vmem, size = 0x2000, scoped, tag = 'input window, operand 0']
    #allocation4 [shape = 's32[2]{0}', space=sflag, size = 0x8, scoped, tag = 'scoped memory for tpu_custom_call.1']
    #allocation5 [shape = 's32[2]{0}', space=sflag, size = 0x8, scoped, tag = 'scoped memory for tpu_custom_call.1']
    #allocation6 [shape = 'u8[786432]{0}', space=vmem, size = 0xc0000, scoped, tag = 'input window, operand 1']
    #allocation7 [shape = 's32[2]{0}', space=sflag, size = 0x8, scoped, tag = 'scoped memory for tpu_custom_call.1']
    #allocation8 [shape = 'u8[24576]{0}', space=vmem, size = 0x6000, scoped, tag = 'output window, operand 0, single buffered']
    %7 = vsyncpa [#allocation4], 0
    %s8 = scalar_lea.sflag [#allocation4], 1
    %9 = vsyncpa %s8, 0
    %10 = vsyncpa [#allocation7], 0
    %s11 = scalar_lea.sflag [#allocation7], 1
    %12 = vsyncpa %s11, 0
    %13 = vsyncpa [#allocation5], 0
    loop: start=0, step=1, limit=6
    $region2: #{tpu_custom_call.1} parent=1 // loop_pre_header
      _
    $region3: #{tpu_custom_call.1} parent=1 // loop_header
      %s15 = sphi 0, %s19
      %p16 = scmp.ge.s32.totalorder %s15, 6
      %s22 = sphi 0, %s34
      %s23 = sphi 0, %s30
      %s24 = sphi 0, %s22
      %s25 = sphi 0, %s23
      %s26 = sphi 0, %s24
      %s27 = sphi 0, %s25
      %s37 = sphi 0, %s39
      %s40 = sphi 0, %s37
      %s41 = sphi 0, %s40
      %s57 = sphi 0, %s41
      %s65 = sphi 0, %s67
      %s68 = sphi 0, %s65
      %s69 = sphi 0, %s68
      %s85 = sphi 0, %s69
      %s91 = sphi 0, %s93
      %s94 = sphi 0, %s91
      %s95 = sphi 0, %s94
      %s111 = sphi 0, %s95
    $region4: #{tpu_custom_call.1} parent=1 // loop_header_branch
      %18 = sbr.rel (%p16) target = $region8
    $region5: #{tpu_custom_call.1} parent=1 // loop_body
      %s20 = ssub.s32 %s15, 1
      %s21 = ssub.s32 %s15, 2
      %s28 = sadd.s32 1, %s23
      %p29 = scmp.ge.s32.totalorder %s28, 4
      %s30 = scalar_select %p29, 0, %s28
      %s31 = sadd.s32 1, %s22
      %s32 = scalar_select %p29, %s31, %s22
      %p33 = scmp.ge.s32.totalorder %s32, 1
      %s34 = scalar_select %p33, 0, %s32
      %s35 = ssub.s32 %s23, %s30
      %p36 = scmp.eq.s32.totalorder %s35, 0
      %s38 = sadd.s32 %s37, 1
      %s39 = scalar_select %p36, %s37, %s38
      %p42 = pneg %p36
      %p43 = scmp.eq.s32.totalorder %s15, 3
      %p44 = por %p42, %p43
      %p45 = scmp.ne.s32.totalorder %s37, %s40
      %p46 = scmp.eq.s32.totalorder %s15, 0
      %p47 = por %p45, %p46
      %p48 = scmp.ne.s32.totalorder %s37, %s40
      %p49 = scmp.eq.s32.totalorder %s20, 3
      %p50 = por %p48, %p49
      %p51 = scmp.ne.s32.totalorder %s40, %s41
      %p52 = scmp.eq.s32.totalorder %s20, 0
      %p53 = por %p51, %p52
      %p54 = scmp.ne.s32.totalorder %s40, %s41
      %p55 = scmp.eq.s32.totalorder %s21, 3
      %p56 = por %p54, %p55
      %p58 = scmp.ne.s32.totalorder %s41, %s57
      %p59 = scmp.eq.s32.totalorder %s21, 0
      %p60 = por %p58, %p59
      %s61 = ssub.s32 %s23, %s30
      %s62 = ssub.s32 %s22, %s34
      %s63 = sor.u32 %s61, %s62
      %p64 = scmp.eq.s32.totalorder %s63, 0
      %s66 = sadd.s32 %s65, 1
      %s67 = scalar_select %p64, %s65, %s66
      %p70 = pneg %p64
      %p71 = scmp.eq.s32.totalorder %s15, 3
      %p72 = por %p70, %p71
      %p73 = scmp.ne.s32.totalorder %s65, %s68
      %p74 = scmp.eq.s32.totalorder %s15, 0
      %p75 = por %p73, %p74
      %p76 = scmp.ne.s32.totalorder %s65, %s68
      %p77 = scmp.eq.s32.totalorder %s20, 3
      %p78 = por %p76, %p77
      %p79 = scmp.ne.s32.totalorder %s68, %s69
      %p80 = scmp.eq.s32.totalorder %s20, 0
      %p81 = por %p79, %p80
      %p82 = scmp.ne.s32.totalorder %s68, %s69
      %p83 = scmp.eq.s32.totalorder %s21, 3
      %p84 = por %p82, %p83
      %p86 = scmp.ne.s32.totalorder %s69, %s85
      %p87 = scmp.eq.s32.totalorder %s21, 0
      %p88 = por %p86, %p87
      %s89 = ssub.s32 %s22, %s34
      %p90 = scmp.eq.s32.totalorder %s89, 0
      %s92 = sadd.s32 %s91, 1
      %s93 = scalar_select %p90, %s91, %s92
      %p96 = pneg %p90
      %p97 = scmp.eq.s32.totalorder %s15, 3
      %p98 = por %p96, %p97
      %p99 = scmp.ne.s32.totalorder %s91, %s94
      %p100 = scmp.eq.s32.totalorder %s15, 0
      %p101 = por %p99, %p100
      %p102 = scmp.ne.s32.totalorder %s91, %s94
      %p103 = scmp.eq.s32.totalorder %s20, 3
      %p104 = por %p102, %p103
      %p105 = scmp.ne.s32.totalorder %s94, %s95
      %p106 = scmp.eq.s32.totalorder %s20, 0
      %p107 = por %p105, %p106
      %p108 = scmp.ne.s32.totalorder %s94, %s95
      %p109 = scmp.eq.s32.totalorder %s21, 3
      %p110 = por %p108, %p109
      %p112 = scmp.ne.s32.totalorder %s95, %s111
      %p113 = scmp.eq.s32.totalorder %s21, 0
      %p114 = por %p112, %p113
      %p115 = scmp.le.s32.totalorder 1, %s15
      %p116 = scmp.lt.s32.totalorder %s15, 5
      %p117 = pnand %p115, %p116
      %p118 = pneg %p117
      // Predicated region
      $region9: #{tpu_custom_call.1} parent=5 // pred_check
        _
      $region10: #{tpu_custom_call.1} parent=5 // pred_check_branch
        %120 = sbr.rel (%p117) target = $region12
      $region11: #{tpu_custom_call.1} parent=5 // pred_region
        %s121 = ssub.s32 %s15, 1
      $region12: #{tpu_custom_call.1} parent=5 // pred_fallthru
        _
      %p122 = scmp.lt.s32.totalorder %s15, 4
      // Predicated region
      $region13: #{tpu_custom_call.1} parent=5 // pred_check
        %p123 = pneg %p122
      $region14: #{tpu_custom_call.1} parent=5 // pred_check_branch
        %125 = sbr.rel (%p123) target = $region16
      $region15: #{tpu_custom_call.1} parent=5 // pred_region
        // Predicated region
        $region17: #{tpu_custom_call.1} parent=15 // pred_check
          %p126 = pneg %p47
        $region18: #{tpu_custom_call.1} parent=15 // pred_check_branch
          %128 = sbr.rel (%p126) target = $region20
        $region19: #{tpu_custom_call.1} parent=15 // pred_region
          %s129 = sand.u32 %s37, 1
          %s130 = scalar_lea.sflag [#allocation4], %s129
          %s131 = sand.u32 %s37, 1
          %s132 = smul.addr %s131, 8
          %s133 = scalar_lea.vmem [#allocation3], %s132
          %s134 = smul.u32 2, %s23
          %s136 = ssub.s32 128, 128
          %137 = vsyncadd %s130, %s136
          %s138 = smul.addr %s134, 64
          %s139 = scalar_lea.hbm %s0, %s138
          %s141 = sshll.u32 %s133, 4
          %s142 = int_to_ptr.vmem [resolvable:$true] %s141
          %144 = dma.hbm_to_vmem [thread:$0]  %s139, 128, %s142, %s130
        $region20: #{tpu_custom_call.1} parent=15 // pred_fallthru
          _
        // Predicated region
        $region21: #{tpu_custom_call.1} parent=15 // pred_check
          %p145 = pneg %p75
        $region22: #{tpu_custom_call.1} parent=15 // pred_check_branch
          %147 = sbr.rel (%p145) target = $region24
        $region23: #{tpu_custom_call.1} parent=15 // pred_region
          %s148 = sand.u32 %s65, 1
          %s149 = scalar_lea.sflag [#allocation7], %s148
          %s150 = sand.u32 %s65, 1
          %s151 = smul.addr %s150, 768
          %s152 = scalar_lea.vmem [#allocation6], %s151
          %s153 = smul.u32 32, %s23
          %s154 = smul.u32 6, %s22
          %s156 = ssub.s32 12288, 12288
          %157 = vsyncadd %s149, %s156
          %s158 = smul.addr %s153, 6
          %s159 = sadd.s32 %s154, %s158
          %s160 = smul.addr %s159, 64
          %s161 = scalar_lea.hbm %s1, %s160
          %s162 = sshll.u32 %s152, 4
          %s163 = int_to_ptr.vmem [resolvable:$true] %s162
          %168 = dma.hbm_to_vmem [thread:$0]  %s161, 12288, %s163, %s149, 384, 384, 24
        $region24: #{tpu_custom_call.1} parent=15 // pred_fallthru
          _
      $region16: #{tpu_custom_call.1} parent=5 // pred_fallthru
        _
      %p169 = scmp.le.s32.totalorder 1, %s15
      %p170 = scmp.lt.s32.totalorder %s15, 5
      %p171 = pnand %p169, %p170
      %p172 = pneg %p171
      // Predicated region
      $region25: #{tpu_custom_call.1} parent=5 // pred_check
        _
      $region26: #{tpu_custom_call.1} parent=5 // pred_check_branch
        %174 = sbr.rel (%p171) target = $region28
      $region27: #{tpu_custom_call.1} parent=5 // pred_region
        %s175 = ssub.s32 %s15, 1
        %s176 = sand.u32 %s40, 1
        %s177 = scalar_lea.sflag [#allocation4], %s176
        %s178 = sand.u32 %s40, 1
        %s179 = smul.addr %s178, 8
        %s180 = scalar_lea.vmem [#allocation3], %s179
        // Predicated region
        $region29: #{tpu_custom_call.1} parent=27 // pred_check
          %p181 = pneg %p53
        $region30: #{tpu_custom_call.1} parent=27 // pred_check_branch
          %183 = sbr.rel (%p181) target = $region32
        $region31: #{tpu_custom_call.1} parent=27 // pred_region
          %184 = dma.done %s177, 128
        $region32: #{tpu_custom_call.1} parent=27 // pred_fallthru
          _
        %s185 = sand.u32 %s68, 1
        %s186 = scalar_lea.sflag [#allocation7], %s185
        %s187 = sand.u32 %s68, 1
        %s188 = smul.addr %s187, 768
        %s189 = scalar_lea.vmem [#allocation6], %s188
        // Predicated region
        $region33: #{tpu_custom_call.1} parent=27 // pred_check
          %p190 = pneg %p81
        $region34: #{tpu_custom_call.1} parent=27 // pred_check_branch
          %192 = sbr.rel (%p190) target = $region36
        $region35: #{tpu_custom_call.1} parent=27 // pred_region
          %193 = dma.done %s186, 12288
        $region36: #{tpu_custom_call.1} parent=27 // pred_fallthru
          _
        %s194 = sand.u32 %s40, 1
        %s195 = scalar_lea.sflag [#allocation4], %s194
        %s196 = sand.u32 %s40, 1
        %s197 = smul.addr %s196, 8
        %s198 = scalar_lea.vmem [#allocation3], %s197
        %p199 = pneg %p53
        %p200 = pneg %p50
        %s201 = sand.u32 %s68, 1
        %s202 = scalar_lea.sflag [#allocation7], %s201
        %s203 = sand.u32 %s68, 1
        %s204 = smul.addr %s203, 768
        %s205 = scalar_lea.vmem [#allocation6], %s204
        %p206 = pneg %p81
        %p207 = pneg %p78
        %p208 = pneg %p107
        %p209 = pneg %p104
        %s210 = smul.u32 2, %s25
        %s211 = smul.u32 32, %s25
        %s212 = smul.u32 6, %s24
        %s213 = smul.u32 6, %s24
        %p214 = scmp.eq.s32.totalorder %s25, 0
        // Predicated region
        $region37: #{tpu_custom_call.1} parent=27 // pred_check
          %p215 = pneg %p214
        $region38: #{tpu_custom_call.1} parent=27 // pred_check_branch
          %217 = sbr.rel (%p215) target = $region40
        $region39: #{tpu_custom_call.1} parent=27 // pred_region
          %218 = vst [vmem:[#allocation2] sm:$0xff] 0.0
          %219 = vst [vmem:[#allocation2 + $0x8] sm:$0xff] 0.0
          %220 = vst [vmem:[#allocation2 + $0x10] sm:$0xff] 0.0
          %221 = vst [vmem:[#allocation2 + $0x18] sm:$0xff] 0.0
          %222 = vst [vmem:[#allocation2 + $0x20] sm:$0xff] 0.0
          %223 = vst [vmem:[#allocation2 + $0x28] sm:$0xff] 0.0
        $region40: #{tpu_custom_call.1} parent=27 // pred_fallthru
          _
        %v224 = vld [vmem:[#allocation2] sm:$0xff]
        %v225 = vld [vmem:[#allocation2 + $0x8] sm:$0xff]
        %v226 = vld [vmem:[#allocation2 + $0x10] sm:$0xff]
        %v227 = vld [vmem:[#allocation2 + $0x18] sm:$0xff]
        %v228 = vld [vmem:[#allocation2 + $0x20] sm:$0xff]
        %v229 = vld [vmem:[#allocation2 + $0x28] sm:$0xff]
        %v230 = vld [vmem:[%s180] sm:$0xff]
        %v231 = vld [vmem:[%s189] sm:$0xff]
        %v232 = vld [vmem:[%s189 + $0x8] sm:$0xff]
        %v233 = vld [vmem:[%s189 + $0x10] sm:$0xff]
        %v234 = vld [vmem:[%s189 + $0x18] sm:$0xff]
        %v235 = vld [vmem:[%s189 + $0x20] sm:$0xff]
        %v236 = vld [vmem:[%s189 + $0x28] sm:$0xff]
        %v237 = vld [vmem:[%s189 + $0x30] sm:$0xff]
        %v238 = vld [vmem:[%s189 + $0x38] sm:$0xff]
        %v239 = vld [vmem:[%s189 + $0x40] sm:$0xff]
        %v240 = vld [vmem:[%s189 + $0x48] sm:$0xff]
        %v241 = vld [vmem:[%s189 + $0x50] sm:$0xff]
        %v242 = vld [vmem:[%s189 + $0x58] sm:$0xff]
        %v243 = vld [vmem:[%s189 + $0x60] sm:$0xff]
        %v244 = vld [vmem:[%s189 + $0x68] sm:$0xff]
        %v245 = vld [vmem:[%s189 + $0x70] sm:$0xff]
        %v246 = vld [vmem:[%s189 + $0x78] sm:$0xff]
        %v247 = vld [vmem:[%s189 + $0x80] sm:$0xff]
        %v248 = vld [vmem:[%s189 + $0x88] sm:$0xff]
        %v249 = vld [vmem:[%s189 + $0x90] sm:$0xff]
        %v250 = vld [vmem:[%s189 + $0x98] sm:$0xff]
        %v251 = vld [vmem:[%s189 + $0xa0] sm:$0xff]
        %v252 = vld [vmem:[%s189 + $0xa8] sm:$0xff]
        %v253 = vld [vmem:[%s189 + $0xb0] sm:$0xff]
        %v254 = vld [vmem:[%s189 + $0xb8] sm:$0xff]
        %v255 = vld [vmem:[%s189 + $0xc0] sm:$0xff]
        %v256 = vld [vmem:[%s189 + $0xc8] sm:$0xff]
        %v257 = vld [vmem:[%s189 + $0xd0] sm:$0xff]
        %v258 = vld [vmem:[%s189 + $0xd8] sm:$0xff]
        %v259 = vld [vmem:[%s189 + $0xe0] sm:$0xff]
        %v260 = vld [vmem:[%s189 + $0xe8] sm:$0xff]
        %v261 = vld [vmem:[%s189 + $0xf0] sm:$0xff]
        %v262 = vld [vmem:[%s189 + $0xf8] sm:$0xff]
        %v263 = vld [vmem:[%s189 + $0x100] sm:$0xff]
        %v264 = vld [vmem:[%s189 + $0x108] sm:$0xff]
        %v265 = vld [vmem:[%s189 + $0x110] sm:$0xff]
        %v266 = vld [vmem:[%s189 + $0x118] sm:$0xff]
        %v267 = vld [vmem:[%s189 + $0x120] sm:$0xff]
        %v268 = vld [vmem:[%s189 + $0x128] sm:$0xff]
        %v269 = vld [vmem:[%s189 + $0x130] sm:$0xff]
        %v270 = vld [vmem:[%s189 + $0x138] sm:$0xff]
        %v271 = vld [vmem:[%s189 + $0x140] sm:$0xff]
        %v272 = vld [vmem:[%s189 + $0x148] sm:$0xff]
        %v273 = vld [vmem:[%s189 + $0x150] sm:$0xff]
        %v274 = vld [vmem:[%s189 + $0x158] sm:$0xff]
        %v275 = vld [vmem:[%s189 + $0x160] sm:$0xff]
        %v276 = vld [vmem:[%s189 + $0x168] sm:$0xff]
        %v277 = vld [vmem:[%s189 + $0x170] sm:$0xff]
        %v278 = vld [vmem:[%s189 + $0x178] sm:$0xff]
        %v279 = vld [vmem:[%s189 + $0x180] sm:$0xff]
        %v280 = vld [vmem:[%s189 + $0x188] sm:$0xff]
        %v281 = vld [vmem:[%s189 + $0x190] sm:$0xff]
        %v282 = vld [vmem:[%s189 + $0x198] sm:$0xff]
        %v283 = vld [vmem:[%s189 + $0x1a0] sm:$0xff]
        %v284 = vld [vmem:[%s189 + $0x1a8] sm:$0xff]
        %v285 = vld [vmem:[%s189 + $0x1b0] sm:$0xff]
        %v286 = vld [vmem:[%s189 + $0x1b8] sm:$0xff]
        %v287 = vld [vmem:[%s189 + $0x1c0] sm:$0xff]
        %v288 = vld [vmem:[%s189 + $0x1c8] sm:$0xff]
        %v289 = vld [vmem:[%s189 + $0x1d0] sm:$0xff]
        %v290 = vld [vmem:[%s189 + $0x1d8] sm:$0xff]
        %v291 = vld [vmem:[%s189 + $0x1e0] sm:$0xff]
        %v292 = vld [vmem:[%s189 + $0x1e8] sm:$0xff]
        %v293 = vld [vmem:[%s189 + $0x1f0] sm:$0xff]
        %v294 = vld [vmem:[%s189 + $0x1f8] sm:$0xff]
        %v295 = vld [vmem:[%s189 + $0x200] sm:$0xff]
        %v296 = vld [vmem:[%s189 + $0x208] sm:$0xff]
        %v297 = vld [vmem:[%s189 + $0x210] sm:$0xff]
        %v298 = vld [vmem:[%s189 + $0x218] sm:$0xff]
        %v299 = vld [vmem:[%s189 + $0x220] sm:$0xff]
        %v300 = vld [vmem:[%s189 + $0x228] sm:$0xff]
        %v301 = vld [vmem:[%s189 + $0x230] sm:$0xff]
        %v302 = vld [vmem:[%s189 + $0x238] sm:$0xff]
        %v303 = vld [vmem:[%s189 + $0x240] sm:$0xff]
        %v304 = vld [vmem:[%s189 + $0x248] sm:$0xff]
        %v305 = vld [vmem:[%s189 + $0x250] sm:$0xff]
        %v306 = vld [vmem:[%s189 + $0x258] sm:$0xff]
        %v307 = vld [vmem:[%s189 + $0x260] sm:$0xff]
        %v308 = vld [vmem:[%s189 + $0x268] sm:$0xff]
        %v309 = vld [vmem:[%s189 + $0x270] sm:$0xff]
        %v310 = vld [vmem:[%s189 + $0x278] sm:$0xff]
        %v311 = vld [vmem:[%s189 + $0x280] sm:$0xff]
        %v312 = vld [vmem:[%s189 + $0x288] sm:$0xff]
        %v313 = vld [vmem:[%s189 + $0x290] sm:$0xff]
        %v314 = vld [vmem:[%s189 + $0x298] sm:$0xff]
        %v315 = vld [vmem:[%s189 + $0x2a0] sm:$0xff]
        %v316 = vld [vmem:[%s189 + $0x2a8] sm:$0xff]
        %v317 = vld [vmem:[%s189 + $0x2b0] sm:$0xff]
        %v318 = vld [vmem:[%s189 + $0x2b8] sm:$0xff]
        %v319 = vld [vmem:[%s189 + $0x2c0] sm:$0xff]
        %v320 = vld [vmem:[%s189 + $0x2c8] sm:$0xff]
        %v321 = vld [vmem:[%s189 + $0x2d0] sm:$0xff]
        %v322 = vld [vmem:[%s189 + $0x2d8] sm:$0xff]
        %v323 = vld [vmem:[%s189 + $0x2e0] sm:$0xff]
        %v324 = vld [vmem:[%s189 + $0x2e8] sm:$0xff]
        %v325 = vld [vmem:[%s189 + $0x2f0] sm:$0xff]
        %v326 = vld [vmem:[%s189 + $0x2f8] sm:$0xff]
        %v328 = vunpack.c.l.b16 %v230
        %v329 = vunpack.c.h.b16 %v230
        %v330 = vpack.c.b16 %v328, %v328
        %v331 = vpack.c.b16 %v329, %v329
        %v430 = vunpack.c.l.b16 %v231
        %v431 = vunpack.c.h.b16 %v231
        %v432 = vunpack.c.l.b16 %v232
        %v433 = vunpack.c.h.b16 %v232
        %v434 = vunpack.c.l.b16 %v233
        %v435 = vunpack.c.h.b16 %v233
        %v436 = vunpack.c.l.b16 %v234
        %v437 = vunpack.c.h.b16 %v234
        %v438 = vunpack.c.l.b16 %v235
        %v439 = vunpack.c.h.b16 %v235
        %v440 = vunpack.c.l.b16 %v236
        %v441 = vunpack.c.h.b16 %v236
        %v442 = vunpack.c.l.b16 %v237
        %v443 = vunpack.c.h.b16 %v237
        %v444 = vunpack.c.l.b16 %v238
        %v445 = vunpack.c.h.b16 %v238
        %v446 = vunpack.c.l.b16 %v239
        %v447 = vunpack.c.h.b16 %v239
        %v448 = vunpack.c.l.b16 %v240
        %v449 = vunpack.c.h.b16 %v240
        %v450 = vunpack.c.l.b16 %v241
        %v451 = vunpack.c.h.b16 %v241
        %v452 = vunpack.c.l.b16 %v242
        %v453 = vunpack.c.h.b16 %v242
        %v454 = vunpack.c.l.b16 %v243
        %v455 = vunpack.c.h.b16 %v243
        %v456 = vunpack.c.l.b16 %v244
        %v457 = vunpack.c.h.b16 %v244
        %v458 = vunpack.c.l.b16 %v245
        %v459 = vunpack.c.h.b16 %v245
        %v460 = vunpack.c.l.b16 %v246
        %v461 = vunpack.c.h.b16 %v246
        %v462 = vunpack.c.l.b16 %v247
        %v463 = vunpack.c.h.b16 %v247
        %v464 = vunpack.c.l.b16 %v248
        %v465 = vunpack.c.h.b16 %v248
        %v466 = vunpack.c.l.b16 %v249
        %v467 = vunpack.c.h.b16 %v249
        %v468 = vunpack.c.l.b16 %v250
        %v469 = vunpack.c.h.b16 %v250
        %v470 = vunpack.c.l.b16 %v251
        %v471 = vunpack.c.h.b16 %v251
        %v472 = vunpack.c.l.b16 %v252
        %v473 = vunpack.c.h.b16 %v252
        %v474 = vunpack.c.l.b16 %v253
        %v475 = vunpack.c.h.b16 %v253
        %v476 = vunpack.c.l.b16 %v254
        %v477 = vunpack.c.h.b16 %v254
        %v478 = vunpack.c.l.b16 %v255
        %v479 = vunpack.c.h.b16 %v255
        %v480 = vunpack.c.l.b16 %v256
        %v481 = vunpack.c.h.b16 %v256
        %v482 = vunpack.c.l.b16 %v257
        %v483 = vunpack.c.h.b16 %v257
        %v484 = vunpack.c.l.b16 %v258
        %v485 = vunpack.c.h.b16 %v258
        %v486 = vunpack.c.l.b16 %v259
        %v487 = vunpack.c.h.b16 %v259
        %v488 = vunpack.c.l.b16 %v260
        %v489 = vunpack.c.h.b16 %v260
        %v490 = vunpack.c.l.b16 %v261
        %v491 = vunpack.c.h.b16 %v261
        %v492 = vunpack.c.l.b16 %v262
        %v493 = vunpack.c.h.b16 %v262
        %v494 = vunpack.c.l.b16 %v263
        %v495 = vunpack.c.h.b16 %v263
        %v496 = vunpack.c.l.b16 %v264
        %v497 = vunpack.c.h.b16 %v264
        %v498 = vunpack.c.l.b16 %v265
        %v499 = vunpack.c.h.b16 %v265
        %v500 = vunpack.c.l.b16 %v266
        %v501 = vunpack.c.h.b16 %v266
        %v502 = vunpack.c.l.b16 %v267
        %v503 = vunpack.c.h.b16 %v267
        %v504 = vunpack.c.l.b16 %v268
        %v505 = vunpack.c.h.b16 %v268
        %v506 = vunpack.c.l.b16 %v269
        %v507 = vunpack.c.h.b16 %v269
        %v508 = vunpack.c.l.b16 %v270
        %v509 = vunpack.c.h.b16 %v270
        %v510 = vunpack.c.l.b16 %v271
        %v511 = vunpack.c.h.b16 %v271
        %v512 = vunpack.c.l.b16 %v272
        %v513 = vunpack.c.h.b16 %v272
        %v514 = vunpack.c.l.b16 %v273
        %v515 = vunpack.c.h.b16 %v273
        %v516 = vunpack.c.l.b16 %v274
        %v517 = vunpack.c.h.b16 %v274
        %v518 = vunpack.c.l.b16 %v275
        %v519 = vunpack.c.h.b16 %v275
        %v520 = vunpack.c.l.b16 %v276
        %v521 = vunpack.c.h.b16 %v276
        %v522 = vunpack.c.l.b16 %v277
        %v523 = vunpack.c.h.b16 %v277
        %v524 = vunpack.c.l.b16 %v278
        %v525 = vunpack.c.h.b16 %v278
        %v526 = vunpack.c.l.b16 %v279
        %v527 = vunpack.c.h.b16 %v279
        %v528 = vunpack.c.l.b16 %v280
        %v529 = vunpack.c.h.b16 %v280
        %v530 = vunpack.c.l.b16 %v281
        %v531 = vunpack.c.h.b16 %v281
        %v532 = vunpack.c.l.b16 %v282
        %v533 = vunpack.c.h.b16 %v282
        %v534 = vunpack.c.l.b16 %v283
        %v535 = vunpack.c.h.b16 %v283
        %v536 = vunpack.c.l.b16 %v284
        %v537 = vunpack.c.h.b16 %v284
        %v538 = vunpack.c.l.b16 %v285
        %v539 = vunpack.c.h.b16 %v285
        %v540 = vunpack.c.l.b16 %v286
        %v541 = vunpack.c.h.b16 %v286
        %v542 = vunpack.c.l.b16 %v287
        %v543 = vunpack.c.h.b16 %v287
        %v544 = vunpack.c.l.b16 %v288
        %v545 = vunpack.c.h.b16 %v288
        %v546 = vunpack.c.l.b16 %v289
        %v547 = vunpack.c.h.b16 %v289
        %v548 = vunpack.c.l.b16 %v290
        %v549 = vunpack.c.h.b16 %v290
        %v550 = vunpack.c.l.b16 %v291
        %v551 = vunpack.c.h.b16 %v291
        %v552 = vunpack.c.l.b16 %v292
        %v553 = vunpack.c.h.b16 %v292
        %v554 = vunpack.c.l.b16 %v293
        %v555 = vunpack.c.h.b16 %v293
        %v556 = vunpack.c.l.b16 %v294
        %v557 = vunpack.c.h.b16 %v294
        %v558 = vunpack.c.l.b16 %v295
        %v559 = vunpack.c.h.b16 %v295
        %v560 = vunpack.c.l.b16 %v296
        %v561 = vunpack.c.h.b16 %v296
        %v562 = vunpack.c.l.b16 %v297
        %v563 = vunpack.c.h.b16 %v297
        %v564 = vunpack.c.l.b16 %v298
        %v565 = vunpack.c.h.b16 %v298
        %v566 = vunpack.c.l.b16 %v299
        %v567 = vunpack.c.h.b16 %v299
        %v568 = vunpack.c.l.b16 %v300
        %v569 = vunpack.c.h.b16 %v300
        %v570 = vunpack.c.l.b16 %v301
        %v571 = vunpack.c.h.b16 %v301
        %v572 = vunpack.c.l.b16 %v302
        %v573 = vunpack.c.h.b16 %v302
        %v574 = vunpack.c.l.b16 %v303
        %v575 = vunpack.c.h.b16 %v303
        %v576 = vunpack.c.l.b16 %v304
        %v577 = vunpack.c.h.b16 %v304
        %v578 = vunpack.c.l.b16 %v305
        %v579 = vunpack.c.h.b16 %v305
        %v580 = vunpack.c.l.b16 %v306
        %v581 = vunpack.c.h.b16 %v306
        %v582 = vunpack.c.l.b16 %v307
        %v583 = vunpack.c.h.b16 %v307
        %v584 = vunpack.c.l.b16 %v308
        %v585 = vunpack.c.h.b16 %v308
        %v586 = vunpack.c.l.b16 %v309
        %v587 = vunpack.c.h.b16 %v309
        %v588 = vunpack.c.l.b16 %v310
        %v589 = vunpack.c.h.b16 %v310
        %v590 = vunpack.c.l.b16 %v311
        %v591 = vunpack.c.h.b16 %v311
        %v592 = vunpack.c.l.b16 %v312
        %v593 = vunpack.c.h.b16 %v312
        %v594 = vunpack.c.l.b16 %v313
        %v595 = vunpack.c.h.b16 %v313
        %v596 = vunpack.c.l.b16 %v314
        %v597 = vunpack.c.h.b16 %v314
        %v598 = vunpack.c.l.b16 %v315
        %v599 = vunpack.c.h.b16 %v315
        %v600 = vunpack.c.l.b16 %v316
        %v601 = vunpack.c.h.b16 %v316
        %v602 = vunpack.c.l.b16 %v317
        %v603 = vunpack.c.h.b16 %v317
        %v604 = vunpack.c.l.b16 %v318
        %v605 = vunpack.c.h.b16 %v318
        %v606 = vunpack.c.l.b16 %v319
        %v607 = vunpack.c.h.b16 %v319
        %v608 = vunpack.c.l.b16 %v320
        %v609 = vunpack.c.h.b16 %v320
        %v610 = vunpack.c.l.b16 %v321
        %v611 = vunpack.c.h.b16 %v321
        %v612 = vunpack.c.l.b16 %v322
        %v613 = vunpack.c.h.b16 %v322
        %v614 = vunpack.c.l.b16 %v323
        %v615 = vunpack.c.h.b16 %v323
        %v616 = vunpack.c.l.b16 %v324
        %v617 = vunpack.c.h.b16 %v324
        %v618 = vunpack.c.l.b16 %v325
        %v619 = vunpack.c.h.b16 %v325
        %v620 = vunpack.c.l.b16 %v326
        %v621 = vunpack.c.h.b16 %v326
        %v622 = vpack.c.b16 %v436, %v430
        %v623 = vpack.c.b16 %v437, %v431
        %v624 = vpack.c.b16 %v438, %v432
        %v625 = vpack.c.b16 %v439, %v433
        %v626 = vpack.c.b16 %v440, %v434
        %v627 = vpack.c.b16 %v441, %v435
        %v628 = vpack.c.b16 %v448, %v442
        %v629 = vpack.c.b16 %v449, %v443
        %v630 = vpack.c.b16 %v450, %v444
        %v631 = vpack.c.b16 %v451, %v445
        %v632 = vpack.c.b16 %v452, %v446
        %v633 = vpack.c.b16 %v453, %v447
        %v634 = vpack.c.b16 %v460, %v454
        %v635 = vpack.c.b16 %v461, %v455
        %v636 = vpack.c.b16 %v462, %v456
        %v637 = vpack.c.b16 %v463, %v457
        %v638 = vpack.c.b16 %v464, %v458
        %v639 = vpack.c.b16 %v465, %v459
        %v640 = vpack.c.b16 %v472, %v466
        %v641 = vpack.c.b16 %v473, %v467
        %v642 = vpack.c.b16 %v474, %v468
        %v643 = vpack.c.b16 %v475, %v469
        %v644 = vpack.c.b16 %v476, %v470
        %v645 = vpack.c.b16 %v477, %v471
        %v646 = vpack.c.b16 %v484, %v478
        %v647 = vpack.c.b16 %v485, %v479
        %v648 = vpack.c.b16 %v486, %v480
        %v649 = vpack.c.b16 %v487, %v481
        %v650 = vpack.c.b16 %v488, %v482
        %v651 = vpack.c.b16 %v489, %v483
        %v652 = vpack.c.b16 %v496, %v490
        %v653 = vpack.c.b16 %v497, %v491
        %v654 = vpack.c.b16 %v498, %v492
        %v655 = vpack.c.b16 %v499, %v493
        %v656 = vpack.c.b16 %v500, %v494
        %v657 = vpack.c.b16 %v501, %v495
        %v658 = vpack.c.b16 %v508, %v502
        %v659 = vpack.c.b16 %v509, %v503
        %v660 = vpack.c.b16 %v510, %v504
        %v661 = vpack.c.b16 %v511, %v505
        %v662 = vpack.c.b16 %v512, %v506
        %v663 = vpack.c.b16 %v513, %v507
        %v664 = vpack.c.b16 %v520, %v514
        %v665 = vpack.c.b16 %v521, %v515
        %v666 = vpack.c.b16 %v522, %v516
        %v667 = vpack.c.b16 %v523, %v517
        %v668 = vpack.c.b16 %v524, %v518
        %v669 = vpack.c.b16 %v525, %v519
        %v670 = vpack.c.b16 %v532, %v526
        %v671 = vpack.c.b16 %v533, %v527
        %v672 = vpack.c.b16 %v534, %v528
        %v673 = vpack.c.b16 %v535, %v529
        %v674 = vpack.c.b16 %v536, %v530
        %v675 = vpack.c.b16 %v537, %v531
        %v676 = vpack.c.b16 %v544, %v538
        %v677 = vpack.c.b16 %v545, %v539
        %v678 = vpack.c.b16 %v546, %v540
        %v679 = vpack.c.b16 %v547, %v541
        %v680 = vpack.c.b16 %v548, %v542
        %v681 = vpack.c.b16 %v549, %v543
        %v682 = vpack.c.b16 %v556, %v550
        %v683 = vpack.c.b16 %v557, %v551
        %v684 = vpack.c.b16 %v558, %v552
        %v685 = vpack.c.b16 %v559, %v553
        %v686 = vpack.c.b16 %v560, %v554
        %v687 = vpack.c.b16 %v561, %v555
        %v688 = vpack.c.b16 %v568, %v562
        %v689 = vpack.c.b16 %v569, %v563
        %v690 = vpack.c.b16 %v570, %v564
        %v691 = vpack.c.b16 %v571, %v565
        %v692 = vpack.c.b16 %v572, %v566
        %v693 = vpack.c.b16 %v573, %v567
        %v694 = vpack.c.b16 %v580, %v574
        %v695 = vpack.c.b16 %v581, %v575
        %v696 = vpack.c.b16 %v582, %v576
        %v697 = vpack.c.b16 %v583, %v577
        %v698 = vpack.c.b16 %v584, %v578
        %v699 = vpack.c.b16 %v585, %v579
        %v700 = vpack.c.b16 %v592, %v586
        %v701 = vpack.c.b16 %v593, %v587
        %v702 = vpack.c.b16 %v594, %v588
        %v703 = vpack.c.b16 %v595, %v589
        %v704 = vpack.c.b16 %v596, %v590
        %v705 = vpack.c.b16 %v597, %v591
        %v706 = vpack.c.b16 %v604, %v598
        %v707 = vpack.c.b16 %v605, %v599
        %v708 = vpack.c.b16 %v606, %v600
        %v709 = vpack.c.b16 %v607, %v601
        %v710 = vpack.c.b16 %v608, %v602
        %v711 = vpack.c.b16 %v609, %v603
        %v712 = vpack.c.b16 %v616, %v610
        %v713 = vpack.c.b16 %v617, %v611
        %v714 = vpack.c.b16 %v618, %v612
        %v715 = vpack.c.b16 %v619, %v613
        %v716 = vpack.c.b16 %v620, %v614
        %v717 = vpack.c.b16 %v621, %v615
        %814 = vmatprep.subr.bf16.mxu0 %v623
        %815 = vmatpush1.bf16.msra.mxu0 %v622
        %816 = vmatprep.subr.bf16.mxu0 %v629
        %817 = vmatpush1.bf16.msra.mxu0 %v628
        %818 = vmatprep.subr.bf16.mxu0 %v635
        %819 = vmatpush1.bf16.msra.mxu0 %v634
        %820 = vmatprep.subr.bf16.mxu0 %v641
        %821 = vmatpush1.bf16.msra.mxu0 %v640
        %822 = vmatprep.subr.bf16.mxu0 %v647
        %823 = vmatpush1.bf16.msra.mxu0 %v646
        %824 = vmatprep.subr.bf16.mxu0 %v653
        %825 = vmatpush1.bf16.msra.mxu0 %v652
        %826 = vmatprep.subr.bf16.mxu0 %v659
        %827 = vmatpush1.bf16.msra.mxu0 %v658
        %828 = vmatprep.subr.bf16.mxu0 %v665
        %829 = vmatpush1.bf16.msra.mxu0 %v664
        %830 = vmatprep.subr.bf16.mxu0 %v671
        %831 = vmatpush1.bf16.msra.mxu0 %v670
        %832 = vmatprep.subr.bf16.mxu0 %v677
        %833 = vmatpush1.bf16.msra.mxu0 %v676
        %834 = vmatprep.subr.bf16.mxu0 %v683
        %835 = vmatpush1.bf16.msra.mxu0 %v682
        %836 = vmatprep.subr.bf16.mxu0 %v689
        %837 = vmatpush1.bf16.msra.mxu0 %v688
        %838 = vmatprep.subr.bf16.mxu0 %v695
        %839 = vmatpush1.bf16.msra.mxu0 %v694
        %840 = vmatprep.subr.bf16.mxu0 %v701
        %841 = vmatpush1.bf16.msra.mxu0 %v700
        %842 = vmatprep.subr.bf16.mxu0 %v707
        %843 = vmatpush1.bf16.msra.mxu0 %v706
        %844 = vmatprep.subr.bf16.mxu0 %v713
        %845 = vmatpush1.bf16.msra.mxu0 %v712
        %846 = vmatprep.mubr.bf16.mxu0 %v331
        %847 = vmatmul.mubr.bf16.gmra.mrb[0].mxu0 %v330
        %v848 = vpop.f32.mrb[0].mxu0
        %v849 = vadd.f32 0.0, %v848
        %v850 = vpop.f32.mrb[0].mxu0
        %v851 = vadd.f32 0.0, %v850
        %v852 = vpop.f32.mrb[0].mxu0
        %v853 = vpop.f32.mrb[0].mxu0
        %854 = vdwg.mxu0
        %855 = vmatprep.subr.bf16.mxu0 %v625
        %856 = vmatpush1.bf16.msra.mxu0 %v624
        %857 = vmatprep.subr.bf16.mxu0 %v631
        %858 = vmatpush1.bf16.msra.mxu0 %v630
        %859 = vmatprep.subr.bf16.mxu0 %v637
        %860 = vmatpush1.bf16.msra.mxu0 %v636
        %861 = vmatprep.subr.bf16.mxu0 %v643
        %862 = vmatpush1.bf16.msra.mxu0 %v642
        %863 = vmatprep.subr.bf16.mxu0 %v649
        %864 = vmatpush1.bf16.msra.mxu0 %v648
        %865 = vmatprep.subr.bf16.mxu0 %v655
        %866 = vmatpush1.bf16.msra.mxu0 %v654
        %867 = vmatprep.subr.bf16.mxu0 %v661
        %868 = vmatpush1.bf16.msra.mxu0 %v660
        %869 = vmatprep.subr.bf16.mxu0 %v667
        %870 = vmatpush1.bf16.msra.mxu0 %v666
        %871 = vmatprep.subr.bf16.mxu0 %v673
        %872 = vmatpush1.bf16.msra.mxu0 %v672
        %873 = vmatprep.subr.bf16.mxu0 %v679
        %874 = vmatpush1.bf16.msra.mxu0 %v678
        %875 = vmatprep.subr.bf16.mxu0 %v685
        %876 = vmatpush1.bf16.msra.mxu0 %v684
        %877 = vmatprep.subr.bf16.mxu0 %v691
        %878 = vmatpush1.bf16.msra.mxu0 %v690
        %879 = vmatprep.subr.bf16.mxu0 %v697
        %880 = vmatpush1.bf16.msra.mxu0 %v696
        %881 = vmatprep.subr.bf16.mxu0 %v703
        %882 = vmatpush1.bf16.msra.mxu0 %v702
        %883 = vmatprep.subr.bf16.mxu0 %v709
        %884 = vmatpush1.bf16.msra.mxu0 %v708
        %885 = vmatprep.subr.bf16.mxu0 %v715
        %886 = vmatpush1.bf16.msra.mxu0 %v714
        %887 = vmatprep.mubr.bf16.mxu0 %v331
        %888 = vmatmul.mubr.bf16.gmra.mrb[0].mxu0 %v330
        %v889 = vpop.f32.mrb[0].mxu0
        %v890 = vadd.f32 0.0, %v889
        %v891 = vpop.f32.mrb[0].mxu0
        %v892 = vadd.f32 0.0, %v891
        %v893 = vpop.f32.mrb[0].mxu0
        %v894 = vpop.f32.mrb[0].mxu0
        %895 = vdwg.mxu0
        %896 = vmatprep.subr.bf16.mxu0 %v627
        %897 = vmatpush1.bf16.msra.mxu0 %v626
        %898 = vmatprep.subr.bf16.mxu0 %v633
        %899 = vmatpush1.bf16.msra.mxu0 %v632
        %900 = vmatprep.subr.bf16.mxu0 %v639
        %901 = vmatpush1.bf16.msra.mxu0 %v638
        %902 = vmatprep.subr.bf16.mxu0 %v645
        %903 = vmatpush1.bf16.msra.mxu0 %v644
        %904 = vmatprep.subr.bf16.mxu0 %v651
        %905 = vmatpush1.bf16.msra.mxu0 %v650
        %906 = vmatprep.subr.bf16.mxu0 %v657
        %907 = vmatpush1.bf16.msra.mxu0 %v656
        %908 = vmatprep.subr.bf16.mxu0 %v663
        %909 = vmatpush1.bf16.msra.mxu0 %v662
        %910 = vmatprep.subr.bf16.mxu0 %v669
        %911 = vmatpush1.bf16.msra.mxu0 %v668
        %912 = vmatprep.subr.bf16.mxu0 %v675
        %913 = vmatpush1.bf16.msra.mxu0 %v674
        %914 = vmatprep.subr.bf16.mxu0 %v681
        %915 = vmatpush1.bf16.msra.mxu0 %v680
        %916 = vmatprep.subr.bf16.mxu0 %v687
        %917 = vmatpush1.bf16.msra.mxu0 %v686
        %918 = vmatprep.subr.bf16.mxu0 %v693
        %919 = vmatpush1.bf16.msra.mxu0 %v692
        %920 = vmatprep.subr.bf16.mxu0 %v699
        %921 = vmatpush1.bf16.msra.mxu0 %v698
        %922 = vmatprep.subr.bf16.mxu0 %v705
        %923 = vmatpush1.bf16.msra.mxu0 %v704
        %924 = vmatprep.subr.bf16.mxu0 %v711
        %925 = vmatpush1.bf16.msra.mxu0 %v710
        %926 = vmatprep.subr.bf16.mxu0 %v717
        %927 = vmatpush1.bf16.msra.mxu0 %v716
        %928 = vmatprep.mubr.bf16.mxu0 %v331
        %929 = vmatmul.mubr.bf16.gmra.mrb[0].mxu0 %v330
        %v930 = vpop.f32.mrb[0].mxu0
        %v931 = vadd.f32 0.0, %v930
        %v932 = vpop.f32.mrb[0].mxu0
        %v933 = vadd.f32 0.0, %v932
        %v934 = vpop.f32.mrb[0].mxu0
        %v935 = vpop.f32.mrb[0].mxu0
        %936 = vdwg.mxu0
        %v937 = vadd.f32 %v224, %v849
        %v938 = vadd.f32 %v225, %v851
        %v939 = vadd.f32 %v226, %v890
        %v940 = vadd.f32 %v227, %v892
        %v941 = vadd.f32 %v228, %v931
        %v942 = vadd.f32 %v229, %v933
        %943 = vst [vmem:[#allocation2] sm:$0xff] %v937
        %944 = vst [vmem:[#allocation2 + $0x8] sm:$0xff] %v938
        %945 = vst [vmem:[#allocation2 + $0x10] sm:$0xff] %v939
        %946 = vst [vmem:[#allocation2 + $0x18] sm:$0xff] %v940
        %947 = vst [vmem:[#allocation2 + $0x20] sm:$0xff] %v941
        %948 = vst [vmem:[#allocation2 + $0x28] sm:$0xff] %v942
        %p949 = scmp.eq.s32.totalorder %s25, 3
        // Predicated region
        $region41: #{tpu_custom_call.1} parent=27 // pred_check
          %p950 = pneg %p949
        $region42: #{tpu_custom_call.1} parent=27 // pred_check_branch
          %952 = sbr.rel (%p950) target = $region44
        $region43: #{tpu_custom_call.1} parent=27 // pred_region
          %v953 = vld [vmem:[#allocation2] sm:$0xff]
          %v954 = vld [vmem:[#allocation2 + $0x8] sm:$0xff]
          %v955 = vld [vmem:[#allocation2 + $0x10] sm:$0xff]
          %v956 = vld [vmem:[#allocation2 + $0x18] sm:$0xff]
          %v957 = vld [vmem:[#allocation2 + $0x20] sm:$0xff]
          %v958 = vld [vmem:[#allocation2 + $0x28] sm:$0xff]
          %959 = vst [vmem:[#allocation8] sm:$0xff] %v953
          %960 = vst [vmem:[#allocation8 + $0x8] sm:$0xff] %v954
          %961 = vst [vmem:[#allocation8 + $0x10] sm:$0xff] %v955
          %962 = vst [vmem:[#allocation8 + $0x18] sm:$0xff] %v956
          %963 = vst [vmem:[#allocation8 + $0x20] sm:$0xff] %v957
          %964 = vst [vmem:[#allocation8 + $0x28] sm:$0xff] %v958
        $region44: #{tpu_custom_call.1} parent=27 // pred_fallthru
          _
        // Predicated region
        $region45: #{tpu_custom_call.1} parent=27 // pred_check
          %p965 = pneg %p104
        $region46: #{tpu_custom_call.1} parent=27 // pred_check_branch
          %967 = sbr.rel (%p965) target = $region48
        $region47: #{tpu_custom_call.1} parent=27 // pred_region
          %s968 = smul.u32 6, %s24
          %s970 = ssub.s32 768, 768
          %971 = vsyncadd [#allocation5], %s970
          %s972 = smul.addr %s968, 128
          %s973 = scalar_lea.hbm %s2, %s972
          %s975 = sshll.u32 [#allocation8], 4
          %s976 = int_to_ptr.vmem [resolvable:$true] %s975
          %978 = dma.vmem_to_hbm [thread:$0]  %s976, 768, %s973, [#allocation5]
        $region48: #{tpu_custom_call.1} parent=27 // pred_fallthru
          _
        // Predicated region
        $region49: #{tpu_custom_call.1} parent=27 // pred_check
          %p979 = pneg %p104
        $region50: #{tpu_custom_call.1} parent=27 // pred_check_branch
          %981 = sbr.rel (%p979) target = $region52
        $region51: #{tpu_custom_call.1} parent=27 // pred_region
          %982 = dma.done [#allocation5], 768
        $region52: #{tpu_custom_call.1} parent=27 // pred_fallthru
          _
      $region28: #{tpu_custom_call.1} parent=5 // pred_fallthru
        _
      %p983 = scmp.le.s32.totalorder 2, %s15
      // Predicated region
      $region53: #{tpu_custom_call.1} parent=5 // pred_check
        %p984 = pneg %p983
      $region54: #{tpu_custom_call.1} parent=5 // pred_check_branch
        %986 = sbr.rel (%p984) target = $region56
      $region55: #{tpu_custom_call.1} parent=5 // pred_region
        %s987 = ssub.s32 %s15, 2
      $region56: #{tpu_custom_call.1} parent=5 // pred_fallthru
        _
    $region6: #{tpu_custom_call.1} parent=1 // loop_footer
      %s19 = sadd.s32 1, %s15
    $region7: #{tpu_custom_call.1} parent=1 // loop_footer_branch
      %14 = sbr.rel target = $region3
    $region8: #{tpu_custom_call.1} parent=1 // loop_exit
      _
    %988 = vsyncpa [#allocation4], 1
    %s989 = scalar_lea.sflag [#allocation4], 1
    %990 = vsyncpa %s989, 1
    %991 = vsyncpa [#allocation7], 1
    %s992 = scalar_lea.sflag [#allocation7], 1
    %993 = vsyncpa %s992, 1
    %994 = vsyncpa [#allocation5], 1
    %s995 = scalar_lea.sflag [#allocation5], 1
    %996 = vsyncpa %s995, 1

</llo_original>
